<compile_context>
chip_gen: v7x
topology: tpu7x:2x2x1
jax: 0.10.0
libtpu: 0.0.40
codegen_flags: <defaults>
</compile_context>

<pallas_src>
import functools

import jax
import jax.numpy as jnp
from jax.experimental import pallas as pl
from jax.experimental.pallas import tpu as pltpu

_LANE = 128       # lane width: pad output feature dim to a multiple of this
_SUBLANE = 8      # sublane width: pad batch to a multiple of this
_TB_TARGET = 1024  # target rows per grid step (bigger tiles amortize ~0.35us/step)


def _round_up(n, m):
    return ((n + m - 1) // m) * m


def mlp_kernel(x_ref, w1_ref, w2_ref, bias_ref, o_ref):
    hidden = w1_ref.shape[1]
    out_pad = w2_ref.shape[1]
    # hidden = relu(x @ W1 + b1): bf16 operands on the MXU, f32 accumulation.
    x = x_ref[...].astype(w1_ref.dtype)                 # (TB, 20) ragged K, masked by Mosaic
    h = jnp.dot(x, w1_ref[...], preferred_element_type=jnp.float32)
    h = jnp.maximum(h + bias_ref[0:1, :hidden], 0.0)
    # out = h @ W2 + b2: (TB,256)x(256,128), lane-dense output block.
    o = jnp.dot(h.astype(w2_ref.dtype), w2_ref[...], preferred_element_type=jnp.float32)
    o_ref[...] = (o + bias_ref[1:2, :out_pad]).astype(o_ref.dtype)


def prepare_params(w1, b1, w2, b2, *, compute_dtype=jnp.bfloat16):
    """One-time packing (NOT in the per-call path):
    - pad W2/b2 output dim to a lane multiple (zero columns -> exact),
    - cast weights to bf16 for native MXU rate (f32 accumulation in-kernel),
    - stack both biases (kept f32) into a single resident block."""
    in_dim, hidden = w1.shape
    out_dim = w2.shape[1]
    out_pad = _round_up(out_dim, _LANE)
    bias_cols = max(hidden, out_pad)

    w1_c = w1.astype(compute_dtype)                                              # (20, 256)
    w2_c = jnp.pad(w2, ((0, 0), (0, out_pad - out_dim))).astype(compute_dtype)   # (256, 128)

    bias = jnp.zeros((2, bias_cols), jnp.float32)
    bias = bias.at[0, :hidden].set(b1.reshape(-1).astype(jnp.float32))
    bias = bias.at[1, :out_dim].set(b2.reshape(-1).astype(jnp.float32))
    return w1_c, w2_c, bias


@functools.partial(jax.jit, static_argnames=("out_dim",))
def mlp_forward(x, w1_c, w2_c, bias, *, out_dim=10):
    """x: (B, 20) f32; w1_c: (20, 256) bf16; w2_c: (256, out_pad) bf16;
    bias: (2, max(256, out_pad)) f32.  Returns (B, out_dim) in x.dtype."""
    B, in_dim = x.shape
    hidden = w1_c.shape[1]
    out_pad = w2_c.shape[1]

    # Batch tiling: >=2 grid steps whenever there is more than one sublane tile
    # of rows, so the "parallel" axis shards across both v7x TensorCores.
    b_sub = _round_up(max(B, _SUBLANE), _SUBLANE)
    if b_sub > _SUBLANE:
        tb_cap = _round_up(-(-b_sub // 2), _SUBLANE)   # ~ceil(b_sub/2), sublane-aligned
    else:
        tb_cap = b_sub
    TB = min(_TB_TARGET, tb_cap)
    B_pad = _round_up(b_sub, TB)

    if B_pad != B:  # only the (cheap) batch dim is padded per call
        x = jnp.pad(x, ((0, B_pad - B), (0, 0)))

    grid = (B_pad // TB,)

    out_padded = pl.pallas_call(
        mlp_kernel,
        out_shape=jax.ShapeDtypeStruct((B_pad, out_pad), x.dtype),
        grid=grid,
        in_specs=[
            pl.BlockSpec((TB, in_dim), lambda i: (i, 0)),       # activations stream (true K)
            pl.BlockSpec((in_dim, hidden), lambda i: (0, 0)),   # weights stay resident
            pl.BlockSpec((hidden, out_pad), lambda i: (0, 0)),
            pl.BlockSpec((2, bias.shape[1]), lambda i: (0, 0)),  # stacked biases, resident
        ],
        out_specs=pl.BlockSpec((TB, out_pad), lambda i: (i, 0)),
        compiler_params=pltpu.CompilerParams(
            dimension_semantics=("parallel",),       # batch tiles across TCs on v7x
            vmem_limit_bytes=32 * 1024 * 1024,       # guardrail; tiles sized far below this
        ),
    )(x, w1_c, w2_c, bias)

    # Slice back to the logical shape. TODO(synk): consumers that accept the
    # padded (B_pad, 128) slab can skip this extra read+write pass.
    return out_padded[:B, :out_dim]


def init_params(key, in_dim=20, hidden_dim=256, out_dim=10, dtype=jnp.float32):
    """Deterministic init mimicking nn.Linear (uniform in +/- 1/sqrt(fan_in)).
    Weights stored as (in, out) so the kernel does plain row-major matmuls."""
    k1, k2, k3, k4 = jax.random.split(key, 4)
    bound1 = 1.0 / (in_dim ** 0.5)
    bound2 = 1.0 / (hidden_dim ** 0.5)
    w1 = jax.random.uniform(k1, (in_dim, hidden_dim), dtype, -bound1, bound1)
    b1 = jax.random.uniform(k2, (1, hidden_dim), dtype, -bound1, bound1)
    w2 = jax.random.uniform(k3, (hidden_dim, out_dim), dtype, -bound2, bound2)
    b2 = jax.random.uniform(k4, (1, out_dim), dtype, -bound2, bound2)
    return w1, b1, w2, b2


if __name__ == "__main__":
    key = jax.random.PRNGKey(0)
    kx, kp = jax.random.split(key)

    # Matches `X = torch.rand(2, 20)` in the reference module.
    x = jax.random.uniform(kx, (2, 20), jnp.float32)
    w1, b1, w2, b2 = init_params(kp)
    params = prepare_params(w1, b1, w2, b2)   # one-time packing, not per call

    out = mlp_forward(x, *params, out_dim=10)
    out = jax.block_until_ready(out)
    assert out.shape == (2, 10)

    # Reference matching the kernel's numerics (bf16 matmuls, f32 accumulate).
    xb, w1b, w2b = (a.astype(jnp.bfloat16) for a in (x, w1, w2))
    h = jnp.maximum(jnp.dot(xb, w1b, preferred_element_type=jnp.float32) + b1, 0.0)
    ref_mixed = jnp.dot(h.astype(jnp.bfloat16), w2b,
                        preferred_element_type=jnp.float32) + b2
    assert jnp.allclose(out, ref_mixed, atol=1e-3, rtol=1e-3)

    # Full-f32 reference (exact PyTorch semantics) with bf16-appropriate tolerance.
    ref_f32 = jnp.maximum(x @ w1 + b1, 0.0) @ w2 + b2
    assert jnp.allclose(out, ref_f32, atol=2e-2, rtol=2e-2)

    print("KERNEL_OK")
</pallas_src>

<mosaic_0001>
module attributes {stable_mosaic.version = 11 : i64} {
  func.func @mlp_kernel(%arg0: i32, %arg1: memref<8x20xf32, #tpu.memory_space<vmem>>, %arg2: memref<20x256xbf16, #tpu.memory_space<vmem>>, %arg3: memref<256x128xbf16, #tpu.memory_space<vmem>>, %arg4: memref<2x256xf32, #tpu.memory_space<vmem>>, %arg5: memref<8x128xf32, #tpu.memory_space<vmem>>) attributes {dimension_semantics = [#tpu.dimension_semantics<parallel>], iteration_bounds = array<i64: 1>, scalar_prefetch = 0 : i64, scratch_operands = 0 : i64, tpu.core_type = #tpu.core_type<tc>, window_params = [{transform_indices = @transform_0, window_bounds = array<i64: 8, 20>}, {pipeline_mode = #tpu.pipeline_mode<synchronous>, transform_indices = @transform_1, window_bounds = array<i64: 20, 256>}, {pipeline_mode = #tpu.pipeline_mode<synchronous>, transform_indices = @transform_2, window_bounds = array<i64: 256, 128>}, {pipeline_mode = #tpu.pipeline_mode<synchronous>, transform_indices = @transform_3, window_bounds = array<i64: 2, 256>}, {transform_indices = @transform_4, window_bounds = array<i64: 8, 128>}]} {
    %c0 = arith.constant 0 : index
    %c0_0 = arith.constant 0 : index
    %0 = vector.load %arg1[%c0, %c0_0] : memref<8x20xf32, #tpu.memory_space<vmem>>, vector<8x20xf32>
    %1 = arith.truncf %0 : vector<8x20xf32> to vector<8x20xbf16>
    %c0_1 = arith.constant 0 : index
    %c0_2 = arith.constant 0 : index
    %2 = vector.load %arg2[%c0_1, %c0_2] : memref<20x256xbf16, #tpu.memory_space<vmem>>, vector<20x256xbf16>
    %cst = arith.constant dense<0.000000e+00> : vector<8x256xf32>
    %3 = tpu.matmul %1, %2, %cst {dimension_numbers = #tpu.dot_dimension_numbers<[1], [0], [0], [1], [0, 0, 1, 1], [], []>} : vector<8x20xbf16>, vector<20x256xbf16>, vector<8x256xf32> -> vector<8x256xf32>
    %c0_3 = arith.constant 0 : index
    %c0_4 = arith.constant 0 : index
    %4 = vector.load %arg4[%c0_3, %c0_4] : memref<2x256xf32, #tpu.memory_space<vmem>>, vector<1x256xf32>
    %5 = vector.broadcast %4 : vector<1x256xf32> to vector<8x256xf32>
    %6 = arith.addf %3, %5 : vector<8x256xf32>
    %cst_5 = arith.constant 0.000000e+00 : f32
    %7 = vector.broadcast %cst_5 : f32 to vector<8x256xf32>
    %8 = arith.maximumf %6, %7 : vector<8x256xf32>
    %9 = arith.truncf %8 : vector<8x256xf32> to vector<8x256xbf16>
    %c0_6 = arith.constant 0 : index
    %c0_7 = arith.constant 0 : index
    %10 = vector.load %arg3[%c0_6, %c0_7] : memref<256x128xbf16, #tpu.memory_space<vmem>>, vector<256x128xbf16>
    %cst_8 = arith.constant dense<0.000000e+00> : vector<8x128xf32>
    %11 = tpu.matmul %9, %10, %cst_8 {dimension_numbers = #tpu.dot_dimension_numbers<[1], [0], [0], [1], [0, 0, 1, 1], [], []>} : vector<8x256xbf16>, vector<256x128xbf16>, vector<8x128xf32> -> vector<8x128xf32>
    %c1 = arith.constant 1 : index
    %c0_9 = arith.constant 0 : index
    %12 = vector.load %arg4[%c1, %c0_9] : memref<2x256xf32, #tpu.memory_space<vmem>>, vector<1x128xf32>
    %13 = vector.broadcast %12 : vector<1x128xf32> to vector<8x128xf32>
    %14 = arith.addf %11, %13 : vector<8x128xf32>
    %c0_10 = arith.constant 0 : index
    %c0_11 = arith.constant 0 : index
    %15 = vector.load %arg5[%c0_10, %c0_11] : memref<8x128xf32, #tpu.memory_space<vmem>>, vector<8x128xf32>
    tpu.vector_store %arg5[%c0_10, %c0_11], %14 {strides = array<i32>} : memref<8x128xf32, #tpu.memory_space<vmem>>, vector<8x128xf32>,
    return
  }
  func.func @transform_0(%arg0: i32) -> (i32, i32) {
    %c0_i32 = arith.constant 0 : i32
    %c0_i32_0 = arith.constant 0 : i32
    return %arg0, %c0_i32 : i32, i32
  }
  func.func @transform_1(%arg0: i32) -> (i32, i32) {
    %c0_i32 = arith.constant 0 : i32
    %c0_i32_0 = arith.constant 0 : i32
    %c0_i32_1 = arith.constant 0 : i32
    return %c0_i32, %c0_i32_0 : i32, i32
  }
  func.func @transform_2(%arg0: i32) -> (i32, i32) {
    %c0_i32 = arith.constant 0 : i32
    %c0_i32_0 = arith.constant 0 : i32
    %c0_i32_1 = arith.constant 0 : i32
    return %c0_i32, %c0_i32_0 : i32, i32
  }
  func.func @transform_3(%arg0: i32) -> (i32, i32) {
    %c0_i32 = arith.constant 0 : i32
    %c0_i32_0 = arith.constant 0 : i32
    %c0_i32_1 = arith.constant 0 : i32
    return %c0_i32, %c0_i32_0 : i32, i32
  }
  func.func @transform_4(%arg0: i32) -> (i32, i32) {
    %c0_i32 = arith.constant 0 : i32
    %c0_i32_0 = arith.constant 0 : i32
    return %arg0, %c0_i32 : i32, i32
  }
}

</mosaic_0001>

<llo_original>
// kernel: mlp_forward.1
$region0: #{mlp_forward.1}
  #allocation0 [shape = 'u32[]', space=smem, size = 0x4, offset = 0x4, fixed_abs, tag = 'smem constant byte address 0x4 - core index']
  #allocation1 [shape = 'u32[144,128]{1,0:T(1,128)}', space=vmem, size = 0x12000, scoped, tag = 'internal scratch']
  %s0 = inlined_call_operand.vmem [shape: f32[8,20], index: 0, kind: input, shape index: {}]
  %s1 = inlined_call_operand.hbm [shape: bf16[20,256], index: 1, kind: input, shape index: {}]
  %s2 = inlined_call_operand.hbm [shape: bf16[256,128], index: 2, kind: input, shape index: {}]
  %s3 = inlined_call_operand.vmem [shape: f32[2,256], index: 3, kind: input, shape index: {}]
  %s4 = inlined_call_operand.vmem [shape: f32[8,128], index: 4, kind: output, shape index: {}]
  %s5 = sld [smem:[#allocation0]]
  $region34: #{mlp_forward.1} parent=0
    _
  %s7 = ssub.s32 1, %s5
  %s8 = scalar_select 0, %s7, %s5
  $region1: #{mlp_forward.1} parent=0
    #allocation2 [shape = 'u8[12288]{0}', space=vmem, size = 0x3000, scoped, tag = 'input window, operand 1, single buffered']
    #allocation3 [shape = 's32[1]{0}', space=sflag, size = 0x4, scoped, tag = 'scoped memory for mlp_forward.1']
    #allocation4 [shape = 'u8[65536]{0}', space=vmem, size = 0x10000, scoped, tag = 'input window, operand 2, single buffered']
    #allocation5 [shape = 's32[1]{0}', space=sflag, size = 0x4, scoped, tag = 'scoped memory for mlp_forward.1']
    %9 = vsyncpa [#allocation3], 0
    %10 = vsyncpa [#allocation5], 0
    // Predicated region
    $region2: #{mlp_forward.1} parent=1 // pred_check
      _
    $region3: #{mlp_forward.1} parent=1 // pred_check_branch
      %12 = sbr.rel (0) target = $region5
    $region4: #{mlp_forward.1} parent=1 // pred_region
      _
    $region5: #{mlp_forward.1} parent=1 // pred_fallthru
      _
    // Predicated region
    $region6: #{mlp_forward.1} parent=1 // pred_check
      _
    $region7: #{mlp_forward.1} parent=1 // pred_check_branch
      %14 = sbr.rel (0) target = $region9
    $region8: #{mlp_forward.1} parent=1 // pred_region
      %s16 = ssub.s32 384, 384
      %17 = vsyncadd [#allocation3], %s16
      %s18 = sshll.u32 [#allocation2], 4
      %s19 = int_to_ptr.vmem [resolvable:$true] %s18
      %24 = dma.hbm_to_vmem [thread:$0]  %s1, 384, %s19, [#allocation3], 128, 128, 8
    $region9: #{mlp_forward.1} parent=1 // pred_fallthru
      _
    // Predicated region
    $region10: #{mlp_forward.1} parent=1 // pred_check
      _
    $region11: #{mlp_forward.1} parent=1 // pred_check_branch
      %26 = sbr.rel (0) target = $region13
    $region12: #{mlp_forward.1} parent=1 // pred_region
      %s28 = ssub.s32 2048, 2048
      %29 = vsyncadd [#allocation5], %s28
      %s30 = sshll.u32 [#allocation4], 4
      %s31 = int_to_ptr.vmem [resolvable:$true] %s30
      %36 = dma.hbm_to_vmem [thread:$0]  %s2, 2048, %s31, [#allocation5], 64, 64, 4
    $region13: #{mlp_forward.1} parent=1 // pred_fallthru
      _
    // Predicated region
    $region14: #{mlp_forward.1} parent=1 // pred_check
      _
    $region15: #{mlp_forward.1} parent=1 // pred_check_branch
      %38 = sbr.rel (0) target = $region17
    $region16: #{mlp_forward.1} parent=1 // pred_region
      _
    $region17: #{mlp_forward.1} parent=1 // pred_fallthru
      _
    // Predicated region
    $region18: #{mlp_forward.1} parent=1 // pred_check
      _
    $region19: #{mlp_forward.1} parent=1 // pred_check_branch
      %40 = sbr.rel (0) target = $region21
    $region20: #{mlp_forward.1} parent=1 // pred_region
      %41 = dma.done [#allocation3], 384
    $region21: #{mlp_forward.1} parent=1 // pred_fallthru
      _
    // Predicated region
    $region22: #{mlp_forward.1} parent=1 // pred_check
      _
    $region23: #{mlp_forward.1} parent=1 // pred_check_branch
      %43 = sbr.rel (0) target = $region25
    $region24: #{mlp_forward.1} parent=1 // pred_region
      %44 = dma.done [#allocation5], 2048
    $region25: #{mlp_forward.1} parent=1 // pred_fallthru
      _
    %v46 = vld [vmem:[%s0] sm:$0xff]
    %v47 = vpack.c.bf16 %v46, %v46
    %v48 = vld [vmem:[#allocation2] sm:$0xff]
    %v49 = vld [vmem:[#allocation2 + $0x8] sm:$0xff]
    %v50 = vld [vmem:[#allocation2 + $0x10] sm:$0x33]
    %v51 = vld [vmem:[%s3] ss:$2 sm:$0x3]
    %v53 = vlaneseq
    %v54 = vshrl.u32 %v53, 7
    %v55 = vsub.s32 0, %v54
    %v56 = vrot.slane %v51, %v55
    %v57 = vlaneseq
    %v58 = vshrl.u32 %v57, 7
    %v59 = vsub.s32 1, %v58
    %v60 = vrot.slane %v51, %v59
    %v66 = vunpack.c.l.b16 %v48
    %v67 = vunpack.c.h.b16 %v48
    %v68 = vunpack.c.l.b16 %v49
    %v69 = vunpack.c.h.b16 %v49
    %v70 = vunpack.c.l.b16 %v50
    %v71 = vunpack.c.h.b16 %v50
    %v72 = vpack.c.b16 %v68, %v66
    %v73 = vpack.c.b16 %v69, %v67
    %v74 = vpack.c.b16 %v70, %v70
    %v75 = vpack.c.b16 %v71, %v71
    %vm78 = vcmask 162816
    %v80 = vsel %vm78, %v47, 0
    %vm82 = vcmask 1041408
    %v84 = vsel %vm82, %v74, 0
    %v87 = vsel %vm82, %v75, 0
    %89 = vmatprep.subr.bf16.mxu0 %v73
    %90 = vmatpush1.bf16.msra.mxu0 %v72
    %91 = vmatprep.subr.bf16.mxu0 %v87
    %92 = vmatpush1.bf16.msra.mxu0 %v84
    %93 = vmatprep.subr.bf16.mxu0 0
    %94 = vmatpush1.bf16.msra.mxu0 0
    %95 = vmatprep.subr.bf16.mxu0 0
    %96 = vmatpush1.bf16.msra.mxu0 0
    %97 = vmatprep.subr.bf16.mxu0 0
    %98 = vmatpush1.bf16.msra.mxu0 0
    %99 = vmatprep.subr.bf16.mxu0 0
    %100 = vmatpush1.bf16.msra.mxu0 0
    %101 = vmatprep.subr.bf16.mxu0 0
    %102 = vmatpush1.bf16.msra.mxu0 0
    %103 = vmatprep.subr.bf16.mxu0 0
    %104 = vmatpush1.bf16.msra.mxu0 0
    %105 = vmatprep.subr.bf16.mxu0 0
    %106 = vmatpush1.bf16.msra.mxu0 0
    %107 = vmatprep.subr.bf16.mxu0 0
    %108 = vmatpush1.bf16.msra.mxu0 0
    %109 = vmatprep.subr.bf16.mxu0 0
    %110 = vmatpush1.bf16.msra.mxu0 0
    %111 = vmatprep.subr.bf16.mxu0 0
    %112 = vmatpush1.bf16.msra.mxu0 0
    %113 = vmatprep.subr.bf16.mxu0 0
    %114 = vmatpush1.bf16.msra.mxu0 0
    %115 = vmatprep.subr.bf16.mxu0 0
    %116 = vmatpush1.bf16.msra.mxu0 0
    %117 = vmatprep.subr.bf16.mxu0 0
    %118 = vmatpush1.bf16.msra.mxu0 0
    %119 = vmatprep.subr.bf16.mxu0 0
    %120 = vmatpush1.bf16.msra.mxu0 0
    %121 = vmatprep.mubr.bf16.mxu0 0
    %122 = vmatmul.mubr.bf16.gmra.mrb[0].mxu0 %v80
    %v123 = vpop.f32.mrb[0].mxu0
    %v124 = vadd.f32 %v56, %v123
    %v125 = vpop.f32.mrb[0].mxu0
    %v126 = vadd.f32 %v60, %v125
    %v127 = vpop.f32.mrb[0].mxu0
    %v128 = vpop.f32.mrb[0].mxu0
    %129 = vdwg.mxu0
    %v130 = vmax.f32 %v124, 0.0
    %v131 = vmax.f32 %v126, 0.0
    %v132 = vpack.c.bf16 %v130, %v130
    %v133 = vpack.c.bf16 %v131, %v131
    %v134 = vld [vmem:[#allocation4] sm:$0xf]
    %v135 = vld [vmem:[#allocation4 + $0x4] sm:$0xf]
    %v136 = vld [vmem:[#allocation4 + $0x8] sm:$0xf]
    %v137 = vld [vmem:[#allocation4 + $0xc] sm:$0xf]
    %v138 = vld [vmem:[#allocation4 + $0x10] sm:$0xf]
    %v139 = vld [vmem:[#allocation4 + $0x14] sm:$0xf]
    %v140 = vld [vmem:[#allocation4 + $0x18] sm:$0xf]
    %v141 = vld [vmem:[#allocation4 + $0x1c] sm:$0xf]
    %v142 = vld [vmem:[#allocation4 + $0x20] sm:$0xf]
    %v143 = vld [vmem:[#allocation4 + $0x24] sm:$0xf]
    %v144 = vld [vmem:[#allocation4 + $0x28] sm:$0xf]
    %v145 = vld [vmem:[#allocation4 + $0x2c] sm:$0xf]
    %v146 = vld [vmem:[#allocation4 + $0x30] sm:$0xf]
    %v147 = vld [vmem:[#allocation4 + $0x34] sm:$0xf]
    %v148 = vld [vmem:[#allocation4 + $0x38] sm:$0xf]
    %v149 = vld [vmem:[#allocation4 + $0x3c] sm:$0xf]
    %v150 = vld [vmem:[#allocation4 + $0x40] sm:$0xf]
    %v151 = vld [vmem:[#allocation4 + $0x44] sm:$0xf]
    %v152 = vld [vmem:[#allocation4 + $0x48] sm:$0xf]
    %v153 = vld [vmem:[#allocation4 + $0x4c] sm:$0xf]
    %v154 = vld [vmem:[#allocation4 + $0x50] sm:$0xf]
    %v155 = vld [vmem:[#allocation4 + $0x54] sm:$0xf]
    %v156 = vld [vmem:[#allocation4 + $0x58] sm:$0xf]
    %v157 = vld [vmem:[#allocation4 + $0x5c] sm:$0xf]
    %v158 = vld [vmem:[#allocation4 + $0x60] sm:$0xf]
    %v159 = vld [vmem:[#allocation4 + $0x64] sm:$0xf]
    %v160 = vld [vmem:[#allocation4 + $0x68] sm:$0xf]
    %v161 = vld [vmem:[#allocation4 + $0x6c] sm:$0xf]
    %v162 = vld [vmem:[#allocation4 + $0x70] sm:$0xf]
    %v163 = vld [vmem:[#allocation4 + $0x74] sm:$0xf]
    %v164 = vld [vmem:[#allocation4 + $0x78] sm:$0xf]
    %v165 = vld [vmem:[#allocation4 + $0x7c] sm:$0xf]
    %v166 = vld [vmem:[%s3 + $0x1] sm:$0x1]
    %v167 = vlaneseq
    %v168 = vshrl.u32 %v167, 7
    %v169 = vsub.s32 0, %v168
    %v170 = vrot.slane %v166, %v169
    %v203 = vunpack.c.l.b16 %v134
    %v204 = vunpack.c.l.b16 %v135
    %v205 = vunpack.c.l.b16 %v136
    %v206 = vunpack.c.l.b16 %v137
    %v207 = vunpack.c.l.b16 %v138
    %v208 = vunpack.c.l.b16 %v139
    %v209 = vunpack.c.l.b16 %v140
    %v210 = vunpack.c.l.b16 %v141
    %v211 = vunpack.c.l.b16 %v142
    %v212 = vunpack.c.l.b16 %v143
    %v213 = vunpack.c.l.b16 %v144
    %v214 = vunpack.c.l.b16 %v145
    %v215 = vunpack.c.l.b16 %v146
    %v216 = vunpack.c.l.b16 %v147
    %v217 = vunpack.c.l.b16 %v148
    %v218 = vunpack.c.l.b16 %v149
    %v219 = vunpack.c.l.b16 %v150
    %v220 = vunpack.c.l.b16 %v151
    %v221 = vunpack.c.l.b16 %v152
    %v222 = vunpack.c.l.b16 %v153
    %v223 = vunpack.c.l.b16 %v154
    %v224 = vunpack.c.l.b16 %v155
    %v225 = vunpack.c.l.b16 %v156
    %v226 = vunpack.c.l.b16 %v157
    %v227 = vunpack.c.l.b16 %v158
    %v228 = vunpack.c.l.b16 %v159
    %v229 = vunpack.c.l.b16 %v160
    %v230 = vunpack.c.l.b16 %v161
    %v231 = vunpack.c.l.b16 %v162
    %v232 = vunpack.c.l.b16 %v163
    %v233 = vunpack.c.l.b16 %v164
    %v234 = vunpack.c.l.b16 %v165
    %v235 = vpack.c.b16 %v204, %v203
    %v236 = vpack.c.b16 %v206, %v205
    %v237 = vpack.c.b16 %v208, %v207
    %v238 = vpack.c.b16 %v210, %v209
    %v239 = vpack.c.b16 %v212, %v211
    %v240 = vpack.c.b16 %v214, %v213
    %v241 = vpack.c.b16 %v216, %v215
    %v242 = vpack.c.b16 %v218, %v217
    %v243 = vpack.c.b16 %v220, %v219
    %v244 = vpack.c.b16 %v222, %v221
    %v245 = vpack.c.b16 %v224, %v223
    %v246 = vpack.c.b16 %v226, %v225
    %v247 = vpack.c.b16 %v228, %v227
    %v248 = vpack.c.b16 %v230, %v229
    %v249 = vpack.c.b16 %v232, %v231
    %v250 = vpack.c.b16 %v234, %v233
    %267 = vmatprep.subr.bf16.mxu0 0
    %268 = vmatpush1.bf16.msra.mxu0 %v235
    %269 = vmatprep.subr.bf16.mxu0 0
    %270 = vmatpush1.bf16.msra.mxu0 %v236
    %271 = vmatprep.subr.bf16.mxu0 0
    %272 = vmatpush1.bf16.msra.mxu0 %v237
    %273 = vmatprep.subr.bf16.mxu0 0
    %274 = vmatpush1.bf16.msra.mxu0 %v238
    %275 = vmatprep.subr.bf16.mxu0 0
    %276 = vmatpush1.bf16.msra.mxu0 %v239
    %277 = vmatprep.subr.bf16.mxu0 0
    %278 = vmatpush1.bf16.msra.mxu0 %v240
    %279 = vmatprep.subr.bf16.mxu0 0
    %280 = vmatpush1.bf16.msra.mxu0 %v241
    %281 = vmatprep.subr.bf16.mxu0 0
    %282 = vmatpush1.bf16.msra.mxu0 %v242
    %283 = vmatprep.subr.bf16.mxu0 0
    %284 = vmatpush1.bf16.msra.mxu0 %v243
    %285 = vmatprep.subr.bf16.mxu0 0
    %286 = vmatpush1.bf16.msra.mxu0 %v244
    %287 = vmatprep.subr.bf16.mxu0 0
    %288 = vmatpush1.bf16.msra.mxu0 %v245
    %289 = vmatprep.subr.bf16.mxu0 0
    %290 = vmatpush1.bf16.msra.mxu0 %v246
    %291 = vmatprep.subr.bf16.mxu0 0
    %292 = vmatpush1.bf16.msra.mxu0 %v247
    %293 = vmatprep.subr.bf16.mxu0 0
    %294 = vmatpush1.bf16.msra.mxu0 %v248
    %295 = vmatprep.subr.bf16.mxu0 0
    %296 = vmatpush1.bf16.msra.mxu0 %v249
    %297 = vmatprep.subr.bf16.mxu0 0
    %298 = vmatpush1.bf16.msra.mxu0 %v250
    %299 = vmatprep.mubr.bf16.mxu0 %v133
    %300 = vmatmul.mubr.bf16.gmra.mrb[0].mxu0 %v132
    %v301 = vpop.f32.mrb[0].mxu0
    %v302 = vadd.f32 %v170, %v301
    %v303 = vpop.f32.mrb[0].mxu0
    %v304 = vpop.f32.mrb[0].mxu0
    %v305 = vpop.f32.mrb[0].mxu0
    %306 = vdwg.mxu0
    %307 = vst [vmem:[%s4] sm:$0xff] %v302
    // Predicated region
    $region26: #{mlp_forward.1} parent=1 // pred_check
      _
    $region27: #{mlp_forward.1} parent=1 // pred_check_branch
      %309 = sbr.rel (0) target = $region29
    $region28: #{mlp_forward.1} parent=1 // pred_region
      _
    $region29: #{mlp_forward.1} parent=1 // pred_fallthru
      _
    // Predicated region
    $region30: #{mlp_forward.1} parent=1 // pred_check
      _
    $region31: #{mlp_forward.1} parent=1 // pred_check_branch
      %311 = sbr.rel (0) target = $region33
    $region32: #{mlp_forward.1} parent=1 // pred_region
      _
    $region33: #{mlp_forward.1} parent=1 // pred_fallthru
      _
    %312 = vsyncpa [#allocation3], 1
    %313 = vsyncpa [#allocation5], 1

</llo_original>
